<compile_context>
chip_gen: v7x
topology: tpu7x:2x2x1
jax: 0.10.0
libtpu: 0.0.40
codegen_flags: <defaults>
</compile_context>

<pallas_src>
import jax
import jax.numpy as jnp
import numpy as np
from jax.experimental import pallas as pl
from jax.experimental.pallas import tpu as pltpu

_LANE = 128
_SUBLANE = 8
# Conservative VMEM budget used for tile sizing: leaves headroom on v7x's
# 64 MiB physical VMEM; v5e/v6e (128 MiB) trivially satisfy it.
_VMEM_BUDGET = 48 * 1024 * 1024


def _round_up(x, m):
    return ((x + m - 1) // m) * m


def _gram_kernel(x_ref, g_ref, o_ref):
    # out_tile = x_tile @ G, with G = P^T P precomputed outside the kernel
    # (columns lane-padded).  Single full-width matmul per grid step.
    x = x_ref[...].astype(g_ref.dtype)           # per-tile cast: free VPU filler
    o_ref[...] = jnp.dot(x, g_ref[...],
                         preferred_element_type=jnp.float32).astype(o_ref.dtype)


def _two_matmul_kernel(x_ref, p_ref, o_ref):
    # y = x @ P^T expressed as a contraction over imdim of BOTH operands, so
    # no transposed copy of P is materialized per grid step; then z = y @ P.
    # The intermediate y stays in vregs / compiler-managed space -- no explicit
    # VMEM scratch round-trip (saves a vst+vld per step and removes a
    # serialization point between the two matmuls).
    x = x_ref[...].astype(p_ref.dtype)
    p = p_ref[...]
    y = jax.lax.dot_general(
        x, p, dimension_numbers=(((1,), (1,)), ((), ())),
        preferred_element_type=jnp.float32)
    # TODO(synk): verify via pl.lower_as_mlir that this contraction does not
    # materialize a per-step vxpose of P on v5e; if it does, pass P^T as an
    # extra single-buffered constant input and use plain A @ B for both dots.
    z = jnp.dot(y.astype(p.dtype), p, preferred_element_type=jnp.float32)
    o_ref[...] = z.astype(o_ref.dtype)


def _pick_row_tile(n_rows, per_row_bytes, const_bytes, budget):
    # Mem-bound kernel: big tiles amortize the ~0.35 us/grid-step overhead and
    # raise HBM-roofline utilization (v6e measurements: ~63% @256 rows ->
    # ~85% @512-1024).  Keep >= 4 grid steps when the problem is big enough so
    # both v7x TensorCores get pipelined work, and keep the double-buffered
    # tile footprint inside the VMEM budget.
    tile = 1024
    while tile > _SUBLANE and n_rows < 4 * tile:
        tile //= 2
    while tile > _SUBLANE and const_bytes + tile * per_row_bytes > budget:
        tile //= 2
    return max(tile, _SUBLANE)


def proj_projT(x, proj_mat, *, row_tile=None, compute_dtype=jnp.float32,
               use_gram=None):
    """out[:, i] = ((x[:, i].reshape(B, H*W) @ P^T) @ P).reshape(B, H, W).

    x: (B, C, H, W); proj_mat (P): (projdim, imdim) with imdim == H*W.
    compute_dtype: dtype fed to the MXU.  Default float32 matches the PyTorch
    reference; pass jnp.bfloat16 for the v6e/v7x fast path (f32 accumulation,
    looser numerics).
    """
    B, C, H, W = x.shape
    imdim = H * W
    projdim = proj_mat.shape[0]
    assert proj_mat.shape[1] == imdim

    N = B * C                                    # independent rows
    xbytes = jnp.dtype(x.dtype).itemsize
    cbytes = jnp.dtype(compute_dtype).itemsize
    obytes = xbytes

    imdim_p = _round_up(imdim, _LANE)            # lane-dense output width
    projdim_p = max(_LANE, _round_up(projdim, _LANE))

    if use_gram is None:
        # Gram path costs no extra FLOPs iff imdim <= 2*projdim_p, and G must
        # comfortably fit VMEM alongside the x/out tiles.
        use_gram = (imdim <= 2 * projdim_p
                    and imdim * imdim_p * cbytes <= _VMEM_BUDGET // 2)

    # No wrapper-side pad/cast pass over x: the kernel reads x in its original
    # dtype and casts per tile (an extra HBM read+write of x would nearly
    # double the input traffic of this bandwidth-bound op).
    xf = x.reshape(N, imdim)

    if use_gram:
        # One-time tiny precompute at full f32 precision; lane-pad the columns
        # so the kernel's output stores are unmasked vst.
        g = jnp.dot(proj_mat.astype(jnp.float32).T,
                    proj_mat.astype(jnp.float32),
                    precision=jax.lax.Precision.HIGHEST,
                    preferred_element_type=jnp.float32)
        if imdim_p != imdim:
            g = jnp.pad(g, ((0, 0), (0, imdim_p - imdim)))
        const_arr = g.astype(compute_dtype)
        kernel = _gram_kernel
        out_w = imdim_p
        flops = 2 * N * imdim * imdim_p
    else:
        p = proj_mat
        if projdim_p != projdim:
            p = jnp.pad(p, ((0, projdim_p - projdim), (0, 0)))  # zero rows: exact
        const_arr = p.astype(compute_dtype)
        kernel = _two_matmul_kernel
        out_w = imdim
        # TODO(synk): lane-pad the output here too when imdim % 128 != 0 so
        # stores are unmasked vst (the Gram path is already lane-dense).
        flops = 4 * N * imdim * projdim_p

    const_bytes = const_arr.shape[0] * const_arr.shape[1] * cbytes
    # Double-buffered x and out tiles (+ f32 intermediate headroom for the
    # two-matmul path); the constant operand is single-buffered.
    per_row = 2 * imdim * xbytes + 2 * out_w * obytes
    if not use_gram:
        per_row += projdim_p * 4

    if row_tile is None:
        row_tile = _pick_row_tile(N, per_row, const_bytes, _VMEM_BUDGET)
    row_tile = max(_SUBLANE, (row_tile // _SUBLANE) * _SUBLANE)
    n_steps = pl.cdiv(N, row_tile)
    # TODO(synk): for huge imdim where even row_tile=8 overflows the budget,
    # add a second grid axis tiling the output width instead of carrying
    # full-imdim blocks (matters most on v7x's 64 MiB VMEM).

    footprint = const_bytes + row_tile * per_row
    vmem_limit = int(min(max(footprint + footprint // 4, 32 << 20), 56 << 20))

    cost = pl.CostEstimate(
        flops=int(flops),
        transcendentals=0,
        bytes_accessed=int(N * imdim * xbytes + const_bytes
                           + N * out_w * obytes),
    )

    out = pl.pallas_call(
        kernel,
        out_shape=jax.ShapeDtypeStruct((N, out_w), x.dtype),
        grid_spec=pltpu.PrefetchScalarGridSpec(
            num_scalar_prefetch=0,
            grid=(n_steps,),
            in_specs=[
                # Row tiles of x (partial last block handled by Pallas masking).
                pl.BlockSpec((row_tile, imdim), lambda i: (i, 0)),
                # Constant operand (G or padded P): same block every step ->
                # single-buffer it (no redundant second VMEM copy).
                pl.BlockSpec(const_arr.shape, lambda i: (0, 0),
                             pipeline_mode=pl.Buffered(1)),
            ],
            out_specs=pl.BlockSpec((row_tile, out_w), lambda i: (i, 0)),
        ),
        compiler_params=pltpu.CompilerParams(
            dimension_semantics=("parallel",),
            vmem_limit_bytes=vmem_limit,
        ),
        cost_estimate=cost,
    )(xf, const_arr)

    if out_w != imdim:
        out = out[:, :imdim]
    return out.reshape(B, C, H, W)


if __name__ == "__main__":
    # Small shapes consistent with the module's forward.
    B, C, H, W = 2, 4, 16, 16
    imdim = H * W            # 256
    projdim = 64

    key = jax.random.PRNGKey(0)
    kx, kp = jax.random.split(key)
    x = jax.random.normal(kx, (B, C, H, W), dtype=jnp.float32)
    # Deterministic "proj_mat.normal_(0, 1)" equivalent.
    proj_mat = jax.random.normal(kp, (projdim, imdim), dtype=jnp.float32)

    # Reference of the exact PyTorch semantics, computed in float64 numpy.
    xf64 = np.asarray(x, dtype=np.float64).reshape(B * C, imdim)
    p64 = np.asarray(proj_mat, dtype=np.float64)
    ref = ((xf64 @ p64.T) @ p64).reshape(B, C, H, W)
    scale = np.max(np.abs(ref))

    def max_rel_err(out):
        return float(np.max(np.abs(np.asarray(out, dtype=np.float64) - ref))
                     / scale)

    # f32 Gram path (auto-selected for these shapes).
    out_gram = jax.block_until_ready(
        proj_projT(x, proj_mat, compute_dtype=jnp.float32))
    e = max_rel_err(out_gram)
    assert e < 5e-3, f"f32 gram path relative error too large: {e}"

    # f32 two-matmul path (forced) -- exercises the non-Gram kernel.
    out_two = jax.block_until_ready(
        proj_projT(x, proj_mat, compute_dtype=jnp.float32, use_gram=False))
    e = max_rel_err(out_two)
    assert e < 5e-3, f"f32 two-matmul path relative error too large: {e}"

    # bf16 MXU-input fast path (f32 accumulation): loose check.
    out_bf16 = jax.block_until_ready(
        proj_projT(x, proj_mat, compute_dtype=jnp.bfloat16))
    e = max_rel_err(out_bf16)
    assert e < 5e-2, f"bf16 path relative error too large: {e}"

    print("KERNEL_OK")
</pallas_src>

<mosaic_0001>
module attributes {stable_mosaic.version = 11 : i64} {
  func.func @_gram_kernel(%arg0: i32, %arg1: memref<8x256xf32, #tpu.memory_space<vmem>>, %arg2: memref<256x256xf32, #tpu.memory_space<vmem>>, %arg3: memref<8x256xf32, #tpu.memory_space<vmem>>) attributes {dimension_semantics = [#tpu.dimension_semantics<parallel>], iteration_bounds = array<i64: 1>, scalar_prefetch = 0 : i64, scratch_operands = 0 : i64, tpu.core_type = #tpu.core_type<tc>, window_params = [{transform_indices = @transform_0, window_bounds = array<i64: 8, 256>}, {pipeline_mode = #tpu.pipeline_mode<synchronous>, transform_indices = @transform_1, window_bounds = array<i64: 256, 256>}, {transform_indices = @transform_2, window_bounds = array<i64: 8, 256>}]} {
    %c0 = arith.constant 0 : index
    %c0_0 = arith.constant 0 : index
    %0 = vector.load %arg1[%c0, %c0_0] : memref<8x256xf32, #tpu.memory_space<vmem>>, vector<8x256xf32>
    %c0_1 = arith.constant 0 : index
    %c0_2 = arith.constant 0 : index
    %1 = vector.load %arg2[%c0_1, %c0_2] : memref<256x256xf32, #tpu.memory_space<vmem>>, vector<256x256xf32>
    %cst = arith.constant dense<0.000000e+00> : vector<8x256xf32>
    %2 = tpu.matmul %0, %1, %cst {dimension_numbers = #tpu.dot_dimension_numbers<[1], [0], [0], [1], [0, 0, 1, 1], [], []>} : vector<8x256xf32>, vector<256x256xf32>, vector<8x256xf32> -> vector<8x256xf32>
    %c0_3 = arith.constant 0 : index
    %c0_4 = arith.constant 0 : index
    %3 = vector.load %arg3[%c0_3, %c0_4] : memref<8x256xf32, #tpu.memory_space<vmem>>, vector<8x256xf32>
    tpu.vector_store %arg3[%c0_3, %c0_4], %2 {strides = array<i32>} : memref<8x256xf32, #tpu.memory_space<vmem>>, vector<8x256xf32>,
    return
  }
  func.func @transform_0(%arg0: i32) -> (i32, i32) {
    %c0_i32 = arith.constant 0 : i32
    %c0_i32_0 = arith.constant 0 : i32
    return %arg0, %c0_i32 : i32, i32
  }
  func.func @transform_1(%arg0: i32) -> (i32, i32) {
    %c0_i32 = arith.constant 0 : i32
    %c0_i32_0 = arith.constant 0 : i32
    %c0_i32_1 = arith.constant 0 : i32
    return %c0_i32, %c0_i32_0 : i32, i32
  }
  func.func @transform_2(%arg0: i32) -> (i32, i32) {
    %c0_i32 = arith.constant 0 : i32
    %c0_i32_0 = arith.constant 0 : i32
    return %arg0, %c0_i32 : i32, i32
  }
}

</mosaic_0001>

<llo_original>
// kernel: tpu_custom_call.1
$region0: #{tpu_custom_call.1}
  #allocation0 [shape = 'u32[]', space=smem, size = 0x4, offset = 0x4, fixed_abs, tag = 'smem constant byte address 0x4 - core index']
  #allocation1 [shape = 'u32[144,128]{1,0:T(1,128)}', space=vmem, size = 0x12000, scoped, tag = 'internal scratch']
  %s0 = inlined_call_operand.hbm [shape: f32[8,256], index: 0, kind: input, shape index: {}]
  %s1 = inlined_call_operand.hbm [shape: f32[256,256], index: 1, kind: input, shape index: {}]
  %s2 = inlined_call_operand.hbm [shape: f32[8,256], index: 2, kind: output, shape index: {}]
  %s3 = sld [smem:[#allocation0]]
  $region26: #{tpu_custom_call.1} parent=0
    _
  %s5 = ssub.s32 1, %s3
  %s6 = scalar_select 0, %s5, %s3
  $region1: #{tpu_custom_call.1} parent=0
    #allocation2 [shape = 'u8[8192]{0}', space=vmem, size = 0x2000, scoped, tag = 'input window, operand 0, single buffered']
    #allocation3 [shape = 's32[1]{0}', space=sflag, size = 0x4, scoped, tag = 'scoped memory for tpu_custom_call.1']
    #allocation4 [shape = 's32[1]{0}', space=sflag, size = 0x4, scoped, tag = 'scoped memory for tpu_custom_call.1']
    #allocation5 [shape = 'u8[262144]{0}', space=vmem, size = 0x40000, scoped, tag = 'input window, operand 1, single buffered']
    #allocation6 [shape = 's32[1]{0}', space=sflag, size = 0x4, scoped, tag = 'scoped memory for tpu_custom_call.1']
    #allocation7 [shape = 'u8[8192]{0}', space=vmem, size = 0x2000, scoped, tag = 'output window, operand 0, single buffered']
    %7 = vsyncpa [#allocation3], 0
    %8 = vsyncpa [#allocation6], 0
    %9 = vsyncpa [#allocation4], 0
    // Predicated region
    $region2: #{tpu_custom_call.1} parent=1 // pred_check
      _
    $region3: #{tpu_custom_call.1} parent=1 // pred_check_branch
      %11 = sbr.rel (0) target = $region5
    $region4: #{tpu_custom_call.1} parent=1 // pred_region
      %s13 = ssub.s32 256, 256
      %14 = vsyncadd [#allocation3], %s13
      %s16 = sshll.u32 [#allocation2], 4
      %s17 = int_to_ptr.vmem [resolvable:$true] %s16
      %19 = dma.hbm_to_vmem [thread:$0]  %s0, 256, %s17, [#allocation3]
    $region5: #{tpu_custom_call.1} parent=1 // pred_fallthru
      _
    // Predicated region
    $region6: #{tpu_custom_call.1} parent=1 // pred_check
      _
    $region7: #{tpu_custom_call.1} parent=1 // pred_check_branch
      %21 = sbr.rel (0) target = $region9
    $region8: #{tpu_custom_call.1} parent=1 // pred_region
      %s23 = ssub.s32 8192, 8192
      %24 = vsyncadd [#allocation6], %s23
      %s25 = sshll.u32 [#allocation5], 4
      %s26 = int_to_ptr.vmem [resolvable:$true] %s25
      %31 = dma.hbm_to_vmem [thread:$0]  %s1, 8192, %s26, [#allocation6], 256, 256, 16
    $region9: #{tpu_custom_call.1} parent=1 // pred_fallthru
      _
    // Predicated region
    $region10: #{tpu_custom_call.1} parent=1 // pred_check
      _
    $region11: #{tpu_custom_call.1} parent=1 // pred_check_branch
      %33 = sbr.rel (0) target = $region13
    $region12: #{tpu_custom_call.1} parent=1 // pred_region
      %34 = dma.done [#allocation3], 256
    $region13: #{tpu_custom_call.1} parent=1 // pred_fallthru
      _
    // Predicated region
    $region14: #{tpu_custom_call.1} parent=1 // pred_check
      _
    $region15: #{tpu_custom_call.1} parent=1 // pred_check_branch
      %36 = sbr.rel (0) target = $region17
    $region16: #{tpu_custom_call.1} parent=1 // pred_region
      %37 = dma.done [#allocation6], 8192
    $region17: #{tpu_custom_call.1} parent=1 // pred_fallthru
      _
    %v38 = vld [vmem:[#allocation2] sm:$0xff]
    %v39 = vld [vmem:[#allocation2 + $0x8] sm:$0xff]
    %v40 = vld [vmem:[#allocation5] sm:$0xff]
    %v41 = vld [vmem:[#allocation5 + $0x8] sm:$0xff]
    %v42 = vld [vmem:[#allocation5 + $0x10] sm:$0xff]
    %v43 = vld [vmem:[#allocation5 + $0x18] sm:$0xff]
    %v44 = vld [vmem:[#allocation5 + $0x20] sm:$0xff]
    %v45 = vld [vmem:[#allocation5 + $0x28] sm:$0xff]
    %v46 = vld [vmem:[#allocation5 + $0x30] sm:$0xff]
    %v47 = vld [vmem:[#allocation5 + $0x38] sm:$0xff]
    %v48 = vld [vmem:[#allocation5 + $0x40] sm:$0xff]
    %v49 = vld [vmem:[#allocation5 + $0x48] sm:$0xff]
    %v50 = vld [vmem:[#allocation5 + $0x50] sm:$0xff]
    %v51 = vld [vmem:[#allocation5 + $0x58] sm:$0xff]
    %v52 = vld [vmem:[#allocation5 + $0x60] sm:$0xff]
    %v53 = vld [vmem:[#allocation5 + $0x68] sm:$0xff]
    %v54 = vld [vmem:[#allocation5 + $0x70] sm:$0xff]
    %v55 = vld [vmem:[#allocation5 + $0x78] sm:$0xff]
    %v56 = vld [vmem:[#allocation5 + $0x80] sm:$0xff]
    %v57 = vld [vmem:[#allocation5 + $0x88] sm:$0xff]
    %v58 = vld [vmem:[#allocation5 + $0x90] sm:$0xff]
    %v59 = vld [vmem:[#allocation5 + $0x98] sm:$0xff]
    %v60 = vld [vmem:[#allocation5 + $0xa0] sm:$0xff]
    %v61 = vld [vmem:[#allocation5 + $0xa8] sm:$0xff]
    %v62 = vld [vmem:[#allocation5 + $0xb0] sm:$0xff]
    %v63 = vld [vmem:[#allocation5 + $0xb8] sm:$0xff]
    %v64 = vld [vmem:[#allocation5 + $0xc0] sm:$0xff]
    %v65 = vld [vmem:[#allocation5 + $0xc8] sm:$0xff]
    %v66 = vld [vmem:[#allocation5 + $0xd0] sm:$0xff]
    %v67 = vld [vmem:[#allocation5 + $0xd8] sm:$0xff]
    %v68 = vld [vmem:[#allocation5 + $0xe0] sm:$0xff]
    %v69 = vld [vmem:[#allocation5 + $0xe8] sm:$0xff]
    %v70 = vld [vmem:[#allocation5 + $0xf0] sm:$0xff]
    %v71 = vld [vmem:[#allocation5 + $0xf8] sm:$0xff]
    %v72 = vld [vmem:[#allocation5 + $0x100] sm:$0xff]
    %v73 = vld [vmem:[#allocation5 + $0x108] sm:$0xff]
    %v74 = vld [vmem:[#allocation5 + $0x110] sm:$0xff]
    %v75 = vld [vmem:[#allocation5 + $0x118] sm:$0xff]
    %v76 = vld [vmem:[#allocation5 + $0x120] sm:$0xff]
    %v77 = vld [vmem:[#allocation5 + $0x128] sm:$0xff]
    %v78 = vld [vmem:[#allocation5 + $0x130] sm:$0xff]
    %v79 = vld [vmem:[#allocation5 + $0x138] sm:$0xff]
    %v80 = vld [vmem:[#allocation5 + $0x140] sm:$0xff]
    %v81 = vld [vmem:[#allocation5 + $0x148] sm:$0xff]
    %v82 = vld [vmem:[#allocation5 + $0x150] sm:$0xff]
    %v83 = vld [vmem:[#allocation5 + $0x158] sm:$0xff]
    %v84 = vld [vmem:[#allocation5 + $0x160] sm:$0xff]
    %v85 = vld [vmem:[#allocation5 + $0x168] sm:$0xff]
    %v86 = vld [vmem:[#allocation5 + $0x170] sm:$0xff]
    %v87 = vld [vmem:[#allocation5 + $0x178] sm:$0xff]
    %v88 = vld [vmem:[#allocation5 + $0x180] sm:$0xff]
    %v89 = vld [vmem:[#allocation5 + $0x188] sm:$0xff]
    %v90 = vld [vmem:[#allocation5 + $0x190] sm:$0xff]
    %v91 = vld [vmem:[#allocation5 + $0x198] sm:$0xff]
    %v92 = vld [vmem:[#allocation5 + $0x1a0] sm:$0xff]
    %v93 = vld [vmem:[#allocation5 + $0x1a8] sm:$0xff]
    %v94 = vld [vmem:[#allocation5 + $0x1b0] sm:$0xff]
    %v95 = vld [vmem:[#allocation5 + $0x1b8] sm:$0xff]
    %v96 = vld [vmem:[#allocation5 + $0x1c0] sm:$0xff]
    %v97 = vld [vmem:[#allocation5 + $0x1c8] sm:$0xff]
    %v98 = vld [vmem:[#allocation5 + $0x1d0] sm:$0xff]
    %v99 = vld [vmem:[#allocation5 + $0x1d8] sm:$0xff]
    %v100 = vld [vmem:[#allocation5 + $0x1e0] sm:$0xff]
    %v101 = vld [vmem:[#allocation5 + $0x1e8] sm:$0xff]
    %v102 = vld [vmem:[#allocation5 + $0x1f0] sm:$0xff]
    %v103 = vld [vmem:[#allocation5 + $0x1f8] sm:$0xff]
    %104 = vmatprep.subr.mxu0 %v41
    %105 = vmatpush1.msra.mxu0 %v40
    %106 = vmatprep.subr.mxu0 %v43
    %107 = vmatpush1.msra.mxu0 %v42
    %108 = vmatprep.subr.mxu0 %v45
    %109 = vmatpush1.msra.mxu0 %v44
    %110 = vmatprep.subr.mxu0 %v47
    %111 = vmatpush1.msra.mxu0 %v46
    %112 = vmatprep.subr.mxu0 %v49
    %113 = vmatpush1.msra.mxu0 %v48
    %114 = vmatprep.subr.mxu0 %v51
    %115 = vmatpush1.msra.mxu0 %v50
    %116 = vmatprep.subr.mxu0 %v53
    %117 = vmatpush1.msra.mxu0 %v52
    %118 = vmatprep.subr.mxu0 %v55
    %119 = vmatpush1.msra.mxu0 %v54
    %120 = vmatprep.subr.mxu0 %v57
    %121 = vmatpush1.msra.mxu0 %v56
    %122 = vmatprep.subr.mxu0 %v59
    %123 = vmatpush1.msra.mxu0 %v58
    %124 = vmatprep.subr.mxu0 %v61
    %125 = vmatpush1.msra.mxu0 %v60
    %126 = vmatprep.subr.mxu0 %v63
    %127 = vmatpush1.msra.mxu0 %v62
    %128 = vmatprep.subr.mxu0 %v65
    %129 = vmatpush1.msra.mxu0 %v64
    %130 = vmatprep.subr.mxu0 %v67
    %131 = vmatpush1.msra.mxu0 %v66
    %132 = vmatprep.subr.mxu0 %v69
    %133 = vmatpush1.msra.mxu0 %v68
    %134 = vmatprep.subr.mxu0 %v71
    %135 = vmatpush1.msra.mxu0 %v70
    %136 = vmatprep.subr.mxu0 %v73
    %137 = vmatpush1.msra.mxu0 %v72
    %138 = vmatprep.subr.mxu0 %v75
    %139 = vmatpush1.msra.mxu0 %v74
    %140 = vmatprep.subr.mxu0 %v77
    %141 = vmatpush1.msra.mxu0 %v76
    %142 = vmatprep.subr.mxu0 %v79
    %143 = vmatpush1.msra.mxu0 %v78
    %144 = vmatprep.subr.mxu0 %v81
    %145 = vmatpush1.msra.mxu0 %v80
    %146 = vmatprep.subr.mxu0 %v83
    %147 = vmatpush1.msra.mxu0 %v82
    %148 = vmatprep.subr.mxu0 %v85
    %149 = vmatpush1.msra.mxu0 %v84
    %150 = vmatprep.subr.mxu0 %v87
    %151 = vmatpush1.msra.mxu0 %v86
    %152 = vmatprep.subr.mxu0 %v89
    %153 = vmatpush1.msra.mxu0 %v88
    %154 = vmatprep.subr.mxu0 %v91
    %155 = vmatpush1.msra.mxu0 %v90
    %156 = vmatprep.subr.mxu0 %v93
    %157 = vmatpush1.msra.mxu0 %v92
    %158 = vmatprep.subr.mxu0 %v95
    %159 = vmatpush1.msra.mxu0 %v94
    %160 = vmatprep.subr.mxu0 %v97
    %161 = vmatpush1.msra.mxu0 %v96
    %162 = vmatprep.subr.mxu0 %v99
    %163 = vmatpush1.msra.mxu0 %v98
    %164 = vmatprep.subr.mxu0 %v101
    %165 = vmatpush1.msra.mxu0 %v100
    %166 = vmatprep.subr.mxu0 %v103
    %167 = vmatpush1.msra.mxu0 %v102
    %168 = vmatprep.mubr.f32.mxu0 %v39
    %169 = vmatmul.mubr.f32.gmra.mrb[0].mxu0 %v38
    %v170 = vpop.f32.mrb[0].mxu0
    %v171 = vadd.f32 0.0, %v170
    %v172 = vpop.f32.mrb[0].mxu0
    %v173 = vadd.f32 0.0, %v172
    %174 = vdwg.mxu0
    %175 = vst [vmem:[#allocation7] sm:$0xff] %v171
    %176 = vst [vmem:[#allocation7 + $0x8] sm:$0xff] %v173
    // Predicated region
    $region18: #{tpu_custom_call.1} parent=1 // pred_check
      _
    $region19: #{tpu_custom_call.1} parent=1 // pred_check_branch
      %178 = sbr.rel (0) target = $region21
    $region20: #{tpu_custom_call.1} parent=1 // pred_region
      %s180 = ssub.s32 256, 256
      %181 = vsyncadd [#allocation4], %s180
      %s183 = sshll.u32 [#allocation7], 4
      %s184 = int_to_ptr.vmem [resolvable:$true] %s183
      %186 = dma.vmem_to_hbm [thread:$0]  %s184, 256, %s2, [#allocation4]
    $region21: #{tpu_custom_call.1} parent=1 // pred_fallthru
      _
    // Predicated region
    $region22: #{tpu_custom_call.1} parent=1 // pred_check
      _
    $region23: #{tpu_custom_call.1} parent=1 // pred_check_branch
      %188 = sbr.rel (0) target = $region25
    $region24: #{tpu_custom_call.1} parent=1 // pred_region
      %189 = dma.done [#allocation4], 256
    $region25: #{tpu_custom_call.1} parent=1 // pred_fallthru
      _
    %190 = vsyncpa [#allocation3], 1
    %191 = vsyncpa [#allocation6], 1
    %192 = vsyncpa [#allocation4], 1

</llo_original>
